<compile_context>
chip_gen: v7x
topology: tpu7x:2x2x1
jax: 0.10.0
libtpu: 0.0.40
codegen_flags: <defaults>
</compile_context>

<pallas_src>
import jax
import jax.numpy as jnp
from jax.experimental import pallas as pl
from jax.experimental.pallas import tpu as pltpu


def critic_fc_kernel(x_ref, w1_ref, b1_ref, w2_ref, b2_ref, o_ref):
    """o[1, tb] = relu(x @ W1 + b1) @ w2 + b2 for one batch tile.

    x_ref  : [tb, D] bf16  (batch tile of state encodings)
    w1_ref : [D, H]  bf16  (resident across grid steps)
    b1_ref : [1, H]  f32
    w2_ref : [1, H]  f32   (second-layer weight laid out as a lane row)
    b2_ref : [1]     f32   (scalar, in SMEM)
    o_ref  : [1, tb] f32   (batch on the lane axis -> lane-dense store)
    """
    # Layer 1: MXU matmul, bf16 operands, f32 accumulation.
    h = jnp.dot(x_ref[...], w1_ref[...], preferred_element_type=jnp.float32)
    h = jnp.maximum(h + b1_ref[...], 0.0)                     # [tb, H] f32

    # Layer 2 (H -> 1): VPU multiply + XLU lane-reduce; keeps the MXU free and
    # yields the result batch-on-lanes for an unmasked store.
    v = jnp.sum(h * w2_ref[...], axis=-1) + b2_ref[0]         # [tb]
    o_ref[...] = v[None, :].astype(o_ref.dtype)               # [1, tb]


def _pick_batch_tile(B):
    # <=256 rows: single full-array tile (always satisfies (8,128) rules).
    # >256 rows: 256-row tiles -> few grid steps, MXU-height tiles, and at
    # least two "parallel" steps for v7x's dual TensorCores.
    return B if B <= 256 else 256


def critic_forward(states_encoding, params, *, tb=None):
    """CriticNetwork.forward(states, rnn_hxs, masks, encodings_feeded=True).

    states_encoding: [B, D] float32 (already-encoded states).
    params: dict with w1 [D,H], b1 [1,H], w2 [H,1], b2 [1,1] (float32).
    Returns value estimates [B, 1] float32.
    """
    w1, b1, w2, b2 = params["w1"], params["b1"], params["w2"], params["b2"]
    B, D = states_encoding.shape
    H = w1.shape[1]
    if tb is None:
        tb = _pick_batch_tile(B)

    # Pad ragged batches up to a tile multiple; padded rows are sliced off.
    Bp = ((B + tb - 1) // tb) * tb
    x = states_encoding.astype(jnp.bfloat16)          # bf16 MXU operand
    if Bp != B:
        x = jnp.pad(x, ((0, Bp - B), (0, 0)))

    w1_bf16 = w1.astype(jnp.bfloat16)                 # store/feed W1 in bf16
    b1_row = b1.reshape(1, H).astype(jnp.float32)
    w2_row = w2.reshape(1, H).astype(jnp.float32)     # [H,1] -> lane row [1,H]
    b2_s = b2.reshape(1).astype(jnp.float32)          # scalar via SMEM

    out = pl.pallas_call(
        critic_fc_kernel,
        out_shape=jax.ShapeDtypeStruct((1, Bp), jnp.float32),
        grid_spec=pltpu.PrefetchScalarGridSpec(
            num_scalar_prefetch=0,
            grid=(Bp // tb,),
            in_specs=[
                pl.BlockSpec((tb, D), lambda i: (i, 0)),            # x tile
                pl.BlockSpec((D, H), lambda i: (0, 0)),             # W1 (resident)
                pl.BlockSpec((1, H), lambda i: (0, 0)),             # b1
                pl.BlockSpec((1, H), lambda i: (0, 0)),             # w2 row
                pl.BlockSpec(memory_space=pltpu.MemorySpace.SMEM),  # b2 scalar
            ],
            out_specs=pl.BlockSpec((1, tb), lambda i: (0, i)),      # lane-dense
        ),
        compiler_params=pltpu.CompilerParams(
            dimension_semantics=("parallel",)),
    )(x, w1_bf16, b1_row, w2_row, b2_s)

    return out.reshape(Bp, 1)[:B]


def init_params(key, input_size, hidden_size):
    """Deterministic init for fc = make_mlp(input_size, hidden_size, 1).

    PyTorch nn.Linear stores weight [out, in]; we store the transpose [in, out]
    so the kernel computes x @ W directly (matches x @ W.T + b). Uses the same
    uniform(-1/sqrt(fan_in), 1/sqrt(fan_in)) scheme as PyTorch's default init.
    """
    k1, k2, k3, k4 = jax.random.split(key, 4)
    lim1 = 1.0 / jnp.sqrt(jnp.float32(input_size))
    lim2 = 1.0 / jnp.sqrt(jnp.float32(hidden_size))
    w1 = jax.random.uniform(k1, (input_size, hidden_size), jnp.float32, -lim1, lim1)
    b1 = jax.random.uniform(k2, (1, hidden_size), jnp.float32, -lim1, lim1)
    w2 = jax.random.uniform(k3, (hidden_size, 1), jnp.float32, -lim2, lim2)
    b2 = jax.random.uniform(k4, (1, 1), jnp.float32, -lim2, lim2)
    return {"w1": w1, "b1": b1, "w2": w2, "b2": b2}


def critic_forward_ref(states_encoding, params):
    """Pure-JAX reference matching the kernel's bf16-in / f32-accumulate layer 1."""
    xb = states_encoding.astype(jnp.bfloat16)
    w1b = params["w1"].astype(jnp.bfloat16)
    h = jnp.dot(xb, w1b, preferred_element_type=jnp.float32)
    h = jnp.maximum(h + params["b1"], 0.0)
    return h @ params["w2"] + params["b2"]


def critic_forward_ref_f32(states_encoding, params):
    """Pure-f32 reference of the original PyTorch forward (for sanity bounds)."""
    h = jnp.maximum(states_encoding @ params["w1"] + params["b1"], 0.0)
    return h @ params["w2"] + params["b2"]


if __name__ == "__main__":
    # Small shapes: batch=8, encoder output size D=32, hidden_size=32.
    # TODO(synk): the injected `state_encoder` (and recurrent rnn_hxs/masks path)
    # is an opaque external module; we exercise the encodings_feeded=True branch.
    B, D, H = 8, 32, 32
    key = jax.random.PRNGKey(0)
    k_params, k_x = jax.random.split(key)

    params = init_params(k_params, D, H)
    states_encoding = jax.random.normal(k_x, (B, D), jnp.float32)

    value = critic_forward(states_encoding, params)
    value = jax.block_until_ready(value)

    ref = critic_forward_ref(states_encoding, params)
    ref_f32 = critic_forward_ref_f32(states_encoding, params)

    assert value.shape == (B, 1)
    assert jnp.allclose(value, ref, atol=1e-3, rtol=1e-3), \
        "mismatch vs bf16-matched reference"
    assert jnp.allclose(value, ref_f32, atol=5e-2, rtol=5e-2), \
        "mismatch vs f32 reference"

    print("KERNEL_OK")
</pallas_src>

<mosaic_0001>
module attributes {stable_mosaic.version = 11 : i64} {
  func.func @critic_fc_kernel(%arg0: i32, %arg1: memref<8x32xbf16, #tpu.memory_space<vmem>>, %arg2: memref<32x32xbf16, #tpu.memory_space<vmem>>, %arg3: memref<1x32xf32, #tpu.memory_space<vmem>>, %arg4: memref<1x32xf32, #tpu.memory_space<vmem>>, %arg5: memref<1xf32, #tpu.memory_space<smem>>, %arg6: memref<1x8xf32, #tpu.memory_space<vmem>>) attributes {dimension_semantics = [#tpu.dimension_semantics<parallel>], iteration_bounds = array<i64: 1>, scalar_prefetch = 0 : i64, scratch_operands = 0 : i64, tpu.core_type = #tpu.core_type<tc>, window_params = [{transform_indices = @transform_0, window_bounds = array<i64: 8, 32>}, {pipeline_mode = #tpu.pipeline_mode<synchronous>, transform_indices = @transform_1, window_bounds = array<i64: 32, 32>}, {pipeline_mode = #tpu.pipeline_mode<synchronous>, transform_indices = @transform_2, window_bounds = array<i64: 1, 32>}, {pipeline_mode = #tpu.pipeline_mode<synchronous>, transform_indices = @transform_3, window_bounds = array<i64: 1, 32>}, {transform_indices = @transform_4, window_bounds = array<i64: 1>}, {transform_indices = @transform_5, window_bounds = array<i64: 1, 8>}]} {
    %c0 = arith.constant 0 : index
    %c0_0 = arith.constant 0 : index
    %0 = vector.load %arg1[%c0, %c0_0] : memref<8x32xbf16, #tpu.memory_space<vmem>>, vector<8x32xbf16>
    %c0_1 = arith.constant 0 : index
    %c0_2 = arith.constant 0 : index
    %1 = vector.load %arg2[%c0_1, %c0_2] : memref<32x32xbf16, #tpu.memory_space<vmem>>, vector<32x32xbf16>
    %cst = arith.constant dense<0.000000e+00> : vector<8x32xf32>
    %2 = tpu.matmul %0, %1, %cst {dimension_numbers = #tpu.dot_dimension_numbers<[1], [0], [0], [1], [0, 0, 1, 1], [], []>} : vector<8x32xbf16>, vector<32x32xbf16>, vector<8x32xf32> -> vector<8x32xf32>
    %c0_3 = arith.constant 0 : index
    %c0_4 = arith.constant 0 : index
    %3 = vector.load %arg3[%c0_3, %c0_4] : memref<1x32xf32, #tpu.memory_space<vmem>>, vector<1x32xf32>
    %4 = vector.broadcast %3 : vector<1x32xf32> to vector<8x32xf32>
    %5 = arith.addf %2, %4 : vector<8x32xf32>
    %cst_5 = arith.constant 0.000000e+00 : f32
    %6 = vector.broadcast %cst_5 : f32 to vector<8x32xf32>
    %7 = arith.maximumf %5, %6 : vector<8x32xf32>
    %c0_6 = arith.constant 0 : index
    %c0_7 = arith.constant 0 : index
    %8 = vector.load %arg4[%c0_6, %c0_7] : memref<1x32xf32, #tpu.memory_space<vmem>>, vector<1x32xf32>
    %9 = vector.broadcast %8 : vector<1x32xf32> to vector<8x32xf32>
    %10 = arith.mulf %7, %9 : vector<8x32xf32>
    %cst_8 = arith.constant dense<0.000000e+00> : vector<8xf32>
    %11 = vector.multi_reduction <add>, %10, %cst_8 [1] : vector<8x32xf32> to vector<8xf32>
    %c0_9 = arith.constant 0 : index
    %12 = memref.load %arg5[%c0_9] : memref<1xf32, #tpu.memory_space<smem>>
    %13 = vector.broadcast %12 : f32 to vector<8xf32>
    %14 = arith.addf %11, %13 : vector<8xf32>
    %15 = vector.shape_cast %14 : vector<8xf32> to vector<1x8xf32>
    %c0_10 = arith.constant 0 : index
    %c0_11 = arith.constant 0 : index
    %16 = vector.load %arg6[%c0_10, %c0_11] : memref<1x8xf32, #tpu.memory_space<vmem>>, vector<1x8xf32>
    tpu.vector_store %arg6[%c0_10, %c0_11], %15 {strides = array<i32>} : memref<1x8xf32, #tpu.memory_space<vmem>>, vector<1x8xf32>,
    return
  }
  func.func @transform_0(%arg0: i32) -> (i32, i32) {
    %c0_i32 = arith.constant 0 : i32
    %c0_i32_0 = arith.constant 0 : i32
    return %arg0, %c0_i32 : i32, i32
  }
  func.func @transform_1(%arg0: i32) -> (i32, i32) {
    %c0_i32 = arith.constant 0 : i32
    %c0_i32_0 = arith.constant 0 : i32
    %c0_i32_1 = arith.constant 0 : i32
    return %c0_i32, %c0_i32_0 : i32, i32
  }
  func.func @transform_2(%arg0: i32) -> (i32, i32) {
    %c0_i32 = arith.constant 0 : i32
    %c0_i32_0 = arith.constant 0 : i32
    %c0_i32_1 = arith.constant 0 : i32
    return %c0_i32, %c0_i32_0 : i32, i32
  }
  func.func @transform_3(%arg0: i32) -> (i32, i32) {
    %c0_i32 = arith.constant 0 : i32
    %c0_i32_0 = arith.constant 0 : i32
    %c0_i32_1 = arith.constant 0 : i32
    return %c0_i32, %c0_i32_0 : i32, i32
  }
  func.func @transform_4(%arg0: i32) -> i32 {
    %c0_i32 = arith.constant 0 : i32
    %c0_i32_0 = arith.constant 0 : i32
    return %c0_i32 : i32
  }
  func.func @transform_5(%arg0: i32) -> (i32, i32) {
    %c0_i32 = arith.constant 0 : i32
    %c0_i32_0 = arith.constant 0 : i32
    return %c0_i32, %arg0 : i32, i32
  }
}

</mosaic_0001>

<llo_original>
// kernel: tpu_custom_call.1
$region0: #{tpu_custom_call.1}
  #allocation0 [shape = 'u32[]', space=smem, size = 0x4, offset = 0x4, fixed_abs, tag = 'smem constant byte address 0x4 - core index']
  #allocation1 [shape = 'u32[144,128]{1,0:T(1,128)}', space=vmem, size = 0x12000, scoped, tag = 'internal scratch']
  #allocation2 [shape = 'f32[1]{0:T(128)S(6)}', space=smem, size = 0x200, scoped, tag = 'scoped memory for tpu_custom_call.1']
  %s0 = inlined_call_operand.hbm [shape: bf16[8,32], index: 0, kind: input, shape index: {}]
  %s1 = inlined_call_operand.hbm [shape: bf16[32,32], index: 1, kind: input, shape index: {}]
  %s2 = inlined_call_operand.vmem [shape: f32[1,32], index: 2, kind: input, shape index: {}]
  %s3 = inlined_call_operand.vmem [shape: f32[1,32], index: 3, kind: input, shape index: {}]
  %s4 = inlined_call_operand.<no memory space> [shape: f32[1], index: 4, kind: input, shape index: {}]
  %s5 = inlined_call_operand.hbm [shape: f32[1,8], index: 5, kind: output, shape index: {}]
  %s6 = sld [smem:[#allocation0]]
  $region38: #{tpu_custom_call.1} parent=0
    _
  %s8 = ssub.s32 1, %s6
  %s9 = scalar_select 0, %s8, %s6
  %10 = sst [smem:[#allocation2]] %s4
  $region1: #{tpu_custom_call.1} parent=0
    #allocation3 [shape = 'u8[2048]{0}', space=vmem, size = 0x800, scoped, tag = 'input window, operand 0, single buffered']
    #allocation4 [shape = 's32[1]{0}', space=sflag, size = 0x4, scoped, tag = 'scoped memory for tpu_custom_call.1']
    #allocation5 [shape = 's32[1]{0}', space=sflag, size = 0x4, scoped, tag = 'scoped memory for tpu_custom_call.1']
    #allocation6 [shape = 'u8[8192]{0}', space=vmem, size = 0x2000, scoped, tag = 'input window, operand 1, single buffered']
    #allocation7 [shape = 's32[1]{0}', space=sflag, size = 0x4, scoped, tag = 'scoped memory for tpu_custom_call.1']
    #allocation8 [shape = 'u8[512]{0}', space=vmem, size = 0x400, scoped, tag = 'output window, operand 0, single buffered']
    %11 = vsyncpa [#allocation4], 0
    %12 = vsyncpa [#allocation7], 0
    %13 = vsyncpa [#allocation5], 0
    // Predicated region
    $region2: #{tpu_custom_call.1} parent=1 // pred_check
      _
    $region3: #{tpu_custom_call.1} parent=1 // pred_check_branch
      %15 = sbr.rel (0) target = $region5
    $region4: #{tpu_custom_call.1} parent=1 // pred_region
      %s17 = ssub.s32 64, 64
      %18 = vsyncadd [#allocation4], %s17
      %s20 = sshll.u32 [#allocation3], 4
      %s21 = int_to_ptr.vmem [resolvable:$true] %s20
      %23 = dma.hbm_to_vmem [thread:$0]  %s0, 64, %s21, [#allocation4]
    $region5: #{tpu_custom_call.1} parent=1 // pred_fallthru
      _
    // Predicated region
    $region6: #{tpu_custom_call.1} parent=1 // pred_check
      _
    $region7: #{tpu_custom_call.1} parent=1 // pred_check_branch
      %25 = sbr.rel (0) target = $region9
    $region8: #{tpu_custom_call.1} parent=1 // pred_region
      %s27 = ssub.s32 256, 256
      %28 = vsyncadd [#allocation7], %s27
      %s29 = sshll.u32 [#allocation6], 4
      %s30 = int_to_ptr.vmem [resolvable:$true] %s29
      %35 = dma.hbm_to_vmem [thread:$0]  %s1, 256, %s30, [#allocation7], 64, 64, 4
    $region9: #{tpu_custom_call.1} parent=1 // pred_fallthru
      _
    // Predicated region
    $region10: #{tpu_custom_call.1} parent=1 // pred_check
      _
    $region11: #{tpu_custom_call.1} parent=1 // pred_check_branch
      %37 = sbr.rel (0) target = $region13
    $region12: #{tpu_custom_call.1} parent=1 // pred_region
      _
    $region13: #{tpu_custom_call.1} parent=1 // pred_fallthru
      _
    // Predicated region
    $region14: #{tpu_custom_call.1} parent=1 // pred_check
      _
    $region15: #{tpu_custom_call.1} parent=1 // pred_check_branch
      %39 = sbr.rel (0) target = $region17
    $region16: #{tpu_custom_call.1} parent=1 // pred_region
      _
    $region17: #{tpu_custom_call.1} parent=1 // pred_fallthru
      _
    // Predicated region
    $region18: #{tpu_custom_call.1} parent=1 // pred_check
      _
    $region19: #{tpu_custom_call.1} parent=1 // pred_check_branch
      %41 = sbr.rel (0) target = $region21
    $region20: #{tpu_custom_call.1} parent=1 // pred_region
      _
    $region21: #{tpu_custom_call.1} parent=1 // pred_fallthru
      _
    // Predicated region
    $region22: #{tpu_custom_call.1} parent=1 // pred_check
      _
    $region23: #{tpu_custom_call.1} parent=1 // pred_check_branch
      %43 = sbr.rel (0) target = $region25
    $region24: #{tpu_custom_call.1} parent=1 // pred_region
      %44 = dma.done [#allocation4], 64
    $region25: #{tpu_custom_call.1} parent=1 // pred_fallthru
      _
    // Predicated region
    $region26: #{tpu_custom_call.1} parent=1 // pred_check
      _
    $region27: #{tpu_custom_call.1} parent=1 // pred_check_branch
      %46 = sbr.rel (0) target = $region29
    $region28: #{tpu_custom_call.1} parent=1 // pred_region
      %47 = dma.done [#allocation7], 256
    $region29: #{tpu_custom_call.1} parent=1 // pred_fallthru
      _
    %v49 = vld [vmem:[#allocation3] sm:$0xf]
    %v50 = vld [vmem:[#allocation6] sm:$0xf]
    %v51 = vld [vmem:[#allocation6 + $0x4] sm:$0xf]
    %v52 = vld [vmem:[#allocation6 + $0x8] sm:$0xf]
    %v53 = vld [vmem:[#allocation6 + $0xc] sm:$0xf]
    %v54 = vld [vmem:[%s2] sm:$0x1]
    %v56 = vlaneseq
    %v57 = vshrl.u32 %v56, 7
    %v58 = vsub.s32 0, %v57
    %v59 = vrot.slane %v54, %v58
    %v65 = vunpack.c.l.b16 %v50
    %v66 = vunpack.c.l.b16 %v51
    %v67 = vunpack.c.l.b16 %v52
    %v68 = vunpack.c.l.b16 %v53
    %v69 = vpack.c.b16 %v66, %v65
    %v70 = vpack.c.b16 %v68, %v67
    %vm73 = vcmask 261120
    %v75 = vsel %vm73, %v49, 0
    %77 = vmatprep.subr.bf16.mxu0 0
    %78 = vmatpush1.bf16.msra.mxu0 %v69
    %79 = vmatprep.subr.bf16.mxu0 0
    %80 = vmatpush1.bf16.msra.mxu0 %v70
    %81 = vmatprep.subr.bf16.mxu0 0
    %82 = vmatpush1.bf16.msra.mxu0 0
    %83 = vmatprep.subr.bf16.mxu0 0
    %84 = vmatpush1.bf16.msra.mxu0 0
    %85 = vmatprep.subr.bf16.mxu0 0
    %86 = vmatpush1.bf16.msra.mxu0 0
    %87 = vmatprep.subr.bf16.mxu0 0
    %88 = vmatpush1.bf16.msra.mxu0 0
    %89 = vmatprep.subr.bf16.mxu0 0
    %90 = vmatpush1.bf16.msra.mxu0 0
    %91 = vmatprep.subr.bf16.mxu0 0
    %92 = vmatpush1.bf16.msra.mxu0 0
    %93 = vmatprep.subr.bf16.mxu0 0
    %94 = vmatpush1.bf16.msra.mxu0 0
    %95 = vmatprep.subr.bf16.mxu0 0
    %96 = vmatpush1.bf16.msra.mxu0 0
    %97 = vmatprep.subr.bf16.mxu0 0
    %98 = vmatpush1.bf16.msra.mxu0 0
    %99 = vmatprep.subr.bf16.mxu0 0
    %100 = vmatpush1.bf16.msra.mxu0 0
    %101 = vmatprep.subr.bf16.mxu0 0
    %102 = vmatpush1.bf16.msra.mxu0 0
    %103 = vmatprep.subr.bf16.mxu0 0
    %104 = vmatpush1.bf16.msra.mxu0 0
    %105 = vmatprep.subr.bf16.mxu0 0
    %106 = vmatpush1.bf16.msra.mxu0 0
    %107 = vmatprep.subr.bf16.mxu0 0
    %108 = vmatpush1.bf16.msra.mxu0 0
    %109 = vmatprep.mubr.bf16.mxu0 0
    %110 = vmatmul.mubr.bf16.gmra.mrb[0].mxu0 %v75
    %v111 = vpop.f32.mrb[0].mxu0
    %v112 = vadd.f32 %v59, %v111
    %v113 = vpop.f32.mrb[0].mxu0
    %v114 = vpop.f32.mrb[0].mxu0
    %v115 = vpop.f32.mrb[0].mxu0
    %116 = vdwg.mxu0
    %v117 = vmax.f32 %v112, 0.0
    %v118 = vld [vmem:[%s3] sm:$0x1]
    %v120 = vlaneseq
    %v121 = vshrl.u32 %v120, 7
    %v122 = vsub.s32 0, %v121
    %v123 = vrot.slane %v118, %v122
    %v125 = vmul.f32 %v117, %v123
    %v126 = vsel %vm73, %v125, 0.0
    %127 = vadd.xlane.f32.xlu0 %v126
    %v128 = vpop.xlane.xlu0 %127
    %s129 = sld [smem:[#allocation2]]
    %v130 = vstv %s129
    %v131 = vadd.f32 %v128, %v130
    %v133 = vlaneseq
    %v134 = vand.u32 %v133, 127
    %v135 = vlaneseq
    %v136 = vshrl.u32 %v135, 7
    %v137 = vsub.s32 %v134, %v136
    %v138 = vrot.slane %v131, %v137
    %vm140 = vcmask 57344
    %141 = vst.msk [vmem:[#allocation8] sm:$0x1] %vm140, %v138
    // Predicated region
    $region30: #{tpu_custom_call.1} parent=1 // pred_check
      _
    $region31: #{tpu_custom_call.1} parent=1 // pred_check_branch
      %143 = sbr.rel (0) target = $region33
    $region32: #{tpu_custom_call.1} parent=1 // pred_region
      %s145 = ssub.s32 16, 16
      %146 = vsyncadd [#allocation5], %s145
      %s148 = sshll.u32 [#allocation8], 4
      %s149 = int_to_ptr.vmem [resolvable:$true] %s148
      %151 = dma.vmem_to_hbm [thread:$0]  %s149, 16, %s5, [#allocation5]
    $region33: #{tpu_custom_call.1} parent=1 // pred_fallthru
      _
    // Predicated region
    $region34: #{tpu_custom_call.1} parent=1 // pred_check
      _
    $region35: #{tpu_custom_call.1} parent=1 // pred_check_branch
      %153 = sbr.rel (0) target = $region37
    $region36: #{tpu_custom_call.1} parent=1 // pred_region
      %154 = dma.done [#allocation5], 16
    $region37: #{tpu_custom_call.1} parent=1 // pred_fallthru
      _
    %155 = vsyncpa [#allocation4], 1
    %156 = vsyncpa [#allocation7], 1
    %157 = vsyncpa [#allocation5], 1

</llo_original>
